<compile_context>
chip_gen: v6e
topology: v6e:2x2x1
jax: 0.10.0
libtpu: 0.0.40
codegen_flags: <defaults>
</compile_context>

<pallas_src>
import functools

import jax
import jax.numpy as jnp
from jax.experimental import pallas as pl
from jax.experimental.pallas import tpu as pltpu

LANE = 128


# ------------------------------ helpers ------------------------------


def _round_up(n, m):
    return ((n + m - 1) // m) * m


def _pad2(a, rows, cols):
    return jnp.pad(a, ((0, rows - a.shape[0]), (0, cols - a.shape[1])))


def _tpu_vmem_bytes():
    try:
        return int(pltpu.get_tpu_info().vmem_capacity_bytes)
    except Exception:
        return 64 * 1024 * 1024  # conservative (v7x-sized) fallback


def _largest_divisor_tile(n, cap):
    """Largest multiple of LANE that divides n and is <= cap (n is a LANE multiple)."""
    cap = max(LANE, min(cap, n))
    t = (cap // LANE) * LANE
    while n % t:
        t -= LANE
    return t


def _choose_tiles(num_nodes, vmem_bytes):
    """Generation-aware (tile_m, tile_k) for the P @ h stages."""
    big_vmem = vmem_bytes >= (100 << 20)        # v5e/v6e: 128 MiB/TC; v7x: 64 MiB/TC
    vmem_limit = (96 << 20) if big_vmem else (40 << 20)
    base = _round_up(num_nodes, LANE)
    tile_k = min(2048, base)                    # lane axis of the P block: long DMA bursts
    n_p = _round_up(num_nodes, tile_k)
    cap_m = 2048 if big_vmem else 1024          # smaller row tile on v7x (64 MiB VMEM)
    tile_m = _largest_divisor_tile(n_p, cap_m)
    # keep >= 2 row tiles so the "parallel" axis can shard across v7x's 2 TensorCores
    if n_p // tile_m < 2 and n_p >= 2 * LANE:
        tile_m = _largest_divisor_tile(n_p, n_p // 2)
    return tile_m, tile_k, n_p, vmem_limit


def _masked_log_softmax(logits, num_classes):
    """log_softmax over the lane axis, ignoring padded class columns."""
    lane = jax.lax.broadcasted_iota(jnp.int32, logits.shape, 1)
    valid = lane < num_classes
    masked = jnp.where(valid, logits, -jnp.inf)
    m = jnp.max(masked, axis=-1, keepdims=True)
    z = masked - m
    e = jnp.where(valid, jnp.exp(z), 0.0)
    lse = jnp.log(jnp.sum(e, axis=-1, keepdims=True))
    return jnp.where(valid, z - lse, 0.0)


# ------------------------------ kernels ------------------------------


def _gcn_small_kernel(p_ref, x_ref, w1_ref, b1_ref, w2_ref, b2_ref, o_ref, *, num_classes):
    """Small-graph fast path: the entire network in one kernel, everything VMEM-resident."""
    h = jnp.dot(x_ref[...], w1_ref[...], preferred_element_type=jnp.float32) + b1_ref[...]
    h = jnp.dot(p_ref[...], h.astype(p_ref.dtype), preferred_element_type=jnp.float32)
    h = jnp.maximum(h, 0.0)
    h = jnp.dot(h, w2_ref[...], preferred_element_type=jnp.float32) + b2_ref[...]
    logits = jnp.dot(p_ref[...], h.astype(p_ref.dtype), preferred_element_type=jnp.float32)
    o_ref[...] = _masked_log_softmax(logits, num_classes).astype(o_ref.dtype)


def _fc1_prop_relu_fc2_kernel(p_ref, x_ref, w1_ref, b1_ref, w2_ref, b2_ref, o_ref, acc_ref):
    """h2 = relu(P @ (x @ W1 + b1)) @ W2 + b2, K-reduction over node-column tiles.

    fc1 is recomputed per (row, K) tile: it rides on idle MXU slots of this HBM-bound
    kernel and removes the h1 HBM write + re-read round trip."""
    @pl.when(pl.program_id(1) == 0)
    def _():
        acc_ref[...] = jnp.zeros_like(acc_ref)

    h1 = jnp.dot(x_ref[...], w1_ref[...], preferred_element_type=jnp.float32) + b1_ref[...]
    acc_ref[...] += jnp.dot(p_ref[...], h1.astype(p_ref.dtype),
                            preferred_element_type=jnp.float32)

    @pl.when(pl.program_id(1) == pl.num_programs(1) - 1)
    def _():
        r = jnp.maximum(acc_ref[...], 0.0)
        o_ref[...] = (jnp.dot(r, w2_ref[...], preferred_element_type=jnp.float32)
                      + b2_ref[...]).astype(o_ref.dtype)


def _prop_logsoftmax_kernel(p_ref, h_ref, o_ref, *, num_classes):
    """out = log_softmax(P @ h); accumulates directly into the resident output block."""
    @pl.when(pl.program_id(1) == 0)
    def _():
        o_ref[...] = jnp.zeros_like(o_ref)

    o_ref[...] += jnp.dot(p_ref[...], h_ref[...], preferred_element_type=jnp.float32)

    @pl.when(pl.program_id(1) == pl.num_programs(1) - 1)
    def _():
        o_ref[...] = _masked_log_softmax(o_ref[...], num_classes).astype(o_ref.dtype)


# ------------------------------ graph preprocessing ------------------------------


def _build_prop_matrix(edge_index, num_nodes):
    """Dense GCN propagation matrix P = D^-1/2 (A_noself + I) D^-1/2.

    Replicates add_remaining_self_loops (drop existing self-loops, add exactly one per node),
    degree(col) normalization, and scatter-add into col of the reference propagate()."""
    row = edge_index[0]
    col = edge_index[1]
    not_self = (row != col).astype(jnp.float32)  # existing self-loops are removed
    a = jnp.zeros((num_nodes, num_nodes), jnp.float32).at[col, row].add(not_self)
    a = a + jnp.eye(num_nodes, dtype=jnp.float32)  # exactly one self-loop per node
    deg = jnp.sum(a, axis=1)                       # = degree(col) incl. edge multiplicity
    dis = jax.lax.rsqrt(deg)
    return (dis[:, None] * a) * dis[None, :]


# ------------------------------ forward ------------------------------


def gcn_forward(x, edge_index, params, *, p_dtype=jnp.bfloat16, small_graph_max=1024):
    """x: [N, input_size] f32, edge_index: [2, E] int32 (row 0 = src/row, row 1 = dst/col).

    p_dtype: storage dtype for the dense propagation matrix P (and the h2 intermediate).
    bfloat16 (default) halves the dominant O(N^2) HBM traffic at ~1e-3 relative error in the
    normalization weights; pass jnp.float32 for the bit-accurate variant. MXU accumulation is
    always f32 (preferred_element_type)."""
    w1, b1, w2, b2 = params
    num_nodes, f_in = x.shape
    hid = w1.shape[1]
    n_cls = w2.shape[1]

    p_mat = _build_prop_matrix(edge_index, num_nodes).astype(p_dtype)

    f_in_p = _round_up(f_in, LANE)
    hid_p = _round_up(hid, LANE)
    cls_p = _round_up(n_cls, LANE)

    vmem_bytes = _tpu_vmem_bytes()

    x32 = x.astype(jnp.float32)
    w1 = w1.astype(jnp.float32)
    b1 = b1.astype(jnp.float32)
    w2 = w2.astype(jnp.float32)
    b2 = b2.astype(jnp.float32)

    # -------- small-graph fast path: one fused kernel, everything resident in VMEM --------
    n_small = _round_up(num_nodes, LANE)
    if n_small <= small_graph_max:
        n_p = n_small
        out = pl.pallas_call(
            functools.partial(_gcn_small_kernel, num_classes=n_cls),
            out_shape=jax.ShapeDtypeStruct((n_p, cls_p), jnp.float32),
            grid=(1,),
            in_specs=[
                pl.BlockSpec((n_p, n_p), lambda i: (0, 0)),
                pl.BlockSpec((n_p, f_in_p), lambda i: (0, 0)),
                pl.BlockSpec((f_in_p, hid_p), lambda i: (0, 0)),
                pl.BlockSpec((1, hid_p), lambda i: (0, 0)),
                pl.BlockSpec((hid_p, cls_p), lambda i: (0, 0)),
                pl.BlockSpec((1, cls_p), lambda i: (0, 0)),
            ],
            out_specs=pl.BlockSpec((n_p, cls_p), lambda i: (0, 0)),
            compiler_params=pltpu.CompilerParams(
                dimension_semantics=("arbitrary",),
                vmem_limit_bytes=min(vmem_bytes // 2, 96 << 20)),
        )(
            _pad2(p_mat, n_p, n_p),
            _pad2(x32, n_p, f_in_p),
            _pad2(w1, f_in_p, hid_p),
            _pad2(b1, 1, hid_p),
            _pad2(w2, hid_p, cls_p),
            _pad2(b2, 1, cls_p),
        )
        return out[:num_nodes, :n_cls]

    # -------- tiled path: (row-tile, K) grids over the dense P matrix --------
    tile_m, tile_k, n_p, vmem_limit = _choose_tiles(num_nodes, vmem_bytes)
    grid_rows = n_p // tile_m
    grid_k = n_p // tile_k

    p_p = _pad2(p_mat, n_p, n_p)
    x_p = _pad2(x32, n_p, f_in_p)
    w1_p = _pad2(w1, f_in_p, hid_p)
    b1_p = _pad2(b1, 1, hid_p)
    w2_p = _pad2(w2, hid_p, cls_p)
    b2_p = _pad2(b2, 1, cls_p)

    cp = pltpu.CompilerParams(
        dimension_semantics=("parallel", "arbitrary"), vmem_limit_bytes=vmem_limit)

    # ---- stage 1 (fc1 fused): h2 = relu(P @ (x @ W1 + b1)) @ W2 + b2 ----
    h2 = pl.pallas_call(
        _fc1_prop_relu_fc2_kernel,
        out_shape=jax.ShapeDtypeStruct((n_p, cls_p), p_dtype),
        grid=(grid_rows, grid_k),
        in_specs=[
            pl.BlockSpec((tile_m, tile_k), lambda i, k: (i, k)),   # P row/col tiles
            pl.BlockSpec((tile_k, f_in_p), lambda i, k: (k, 0)),   # x column blocks
            pl.BlockSpec((f_in_p, hid_p), lambda i, k: (0, 0)),    # W1 resident
            pl.BlockSpec((1, hid_p), lambda i, k: (0, 0)),         # b1 resident
            pl.BlockSpec((hid_p, cls_p), lambda i, k: (0, 0)),     # W2 resident
            pl.BlockSpec((1, cls_p), lambda i, k: (0, 0)),         # b2 resident
        ],
        out_specs=pl.BlockSpec((tile_m, cls_p), lambda i, k: (i, 0)),
        scratch_shapes=[pltpu.VMEM((tile_m, hid_p), jnp.float32)],
        compiler_params=cp,
    )(p_p, x_p, w1_p, b1_p, w2_p, b2_p)

    # ---- stage 2: out = log_softmax(P @ h2) ----
    out = pl.pallas_call(
        functools.partial(_prop_logsoftmax_kernel, num_classes=n_cls),
        out_shape=jax.ShapeDtypeStruct((n_p, cls_p), jnp.float32),
        grid=(grid_rows, grid_k),
        in_specs=[
            pl.BlockSpec((tile_m, tile_k), lambda i, k: (i, k)),
            pl.BlockSpec((tile_k, cls_p), lambda i, k: (k, 0)),
        ],
        out_specs=pl.BlockSpec((tile_m, cls_p), lambda i, k: (i, 0)),
        compiler_params=cp,
    )(p_p, h2)

    return out[:num_nodes, :n_cls]


# ------------------------------ params / reference ------------------------------


def init_params(key, input_size, hidden_size, output_size):
    """Linear weights stored [in, out] (transpose of torch); biases kept 2D [1, out]."""
    ks = jax.random.split(key, 4)

    def lin(kw, kb, fan_in, fan_out):
        bound = 1.0 / jnp.sqrt(fan_in)
        w = jax.random.uniform(kw, (fan_in, fan_out), jnp.float32, -bound, bound)
        b = jax.random.uniform(kb, (1, fan_out), jnp.float32, -bound, bound)
        return w, b

    w1, b1 = lin(ks[0], ks[1], input_size, hidden_size)
    w2, b2 = lin(ks[2], ks[3], hidden_size, output_size)
    return (w1, b1, w2, b2)


def gcn_reference(x, edge_index, params):
    """Plain-JAX reference mirroring the PyTorch GCN forward."""
    w1, b1, w2, b2 = params
    p = _build_prop_matrix(edge_index, x.shape[0])
    h = x @ w1 + b1
    h = p @ h
    h = jnp.maximum(h, 0.0)
    h = h @ w2 + b2
    h = p @ h
    return jax.nn.log_softmax(h, axis=1)


if __name__ == "__main__":
    key = jax.random.PRNGKey(0)
    k_x, k_e, k_p, k_x2, k_e2 = jax.random.split(key, 5)

    # small graph (fast path): 16 nodes, 8 input features, hidden 32, 4 classes, 48 edges
    N, F_IN, HID, NCLS, E = 16, 8, 32, 4, 48
    x = jax.random.normal(k_x, (N, F_IN), jnp.float32)
    edge_index = jax.random.randint(k_e, (2, E), 0, N, jnp.int32)
    params = init_params(k_p, F_IN, HID, NCLS)

    ref = gcn_reference(x, edge_index, params)

    # exact (f32-P) path, tight tolerance
    out_f32 = jax.block_until_ready(gcn_forward(x, edge_index, params, p_dtype=jnp.float32))
    assert out_f32.shape == (N, NCLS)
    assert jnp.allclose(out_f32, ref, atol=2e-4, rtol=2e-4), "f32 path mismatch vs reference"

    # default bf16-P path (halved HBM traffic), looser tolerance for the bf16 normalization
    out_bf16 = jax.block_until_ready(gcn_forward(x, edge_index, params))
    assert jnp.allclose(out_bf16, ref, atol=3e-2, rtol=3e-2), "bf16 path mismatch vs reference"

    # slightly larger graph, forcing the tiled (row, K) path to be exercised
    N2, E2 = 300, 1200
    x2 = jax.random.normal(k_x2, (N2, F_IN), jnp.float32)
    edge_index2 = jax.random.randint(k_e2, (2, E2), 0, N2, jnp.int32)
    ref2 = gcn_reference(x2, edge_index2, params)
    out2 = jax.block_until_ready(
        gcn_forward(x2, edge_index2, params, p_dtype=jnp.float32, small_graph_max=0))
    assert out2.shape == (N2, NCLS)
    assert jnp.allclose(out2, ref2, atol=2e-3, rtol=2e-3), "tiled path mismatch vs reference"

    print("KERNEL_OK")
</pallas_src>

<mosaic_0001>
module attributes {stable_mosaic.version = 11 : i64} {
  func.func @_gcn_small_kernel(%arg0: i32, %arg1: memref<128x128xf32, #tpu.memory_space<vmem>>, %arg2: memref<128x128xf32, #tpu.memory_space<vmem>>, %arg3: memref<128x128xf32, #tpu.memory_space<vmem>>, %arg4: memref<1x128xf32, #tpu.memory_space<vmem>>, %arg5: memref<128x128xf32, #tpu.memory_space<vmem>>, %arg6: memref<1x128xf32, #tpu.memory_space<vmem>>, %arg7: memref<128x128xf32, #tpu.memory_space<vmem>>) attributes {dimension_semantics = [#tpu.dimension_semantics<arbitrary>], iteration_bounds = array<i64: 1>, scalar_prefetch = 0 : i64, scratch_operands = 0 : i64, tpu.core_type = #tpu.core_type<tc>, window_params = [{pipeline_mode = #tpu.pipeline_mode<synchronous>, transform_indices = @transform_0, window_bounds = array<i64: 128, 128>}, {pipeline_mode = #tpu.pipeline_mode<synchronous>, transform_indices = @transform_1, window_bounds = array<i64: 128, 128>}, {pipeline_mode = #tpu.pipeline_mode<synchronous>, transform_indices = @transform_2, window_bounds = array<i64: 128, 128>}, {pipeline_mode = #tpu.pipeline_mode<synchronous>, transform_indices = @transform_3, window_bounds = array<i64: 1, 128>}, {pipeline_mode = #tpu.pipeline_mode<synchronous>, transform_indices = @transform_4, window_bounds = array<i64: 128, 128>}, {pipeline_mode = #tpu.pipeline_mode<synchronous>, transform_indices = @transform_5, window_bounds = array<i64: 1, 128>}, {pipeline_mode = #tpu.pipeline_mode<synchronous>, transform_indices = @transform_6, window_bounds = array<i64: 128, 128>}]} {
    %c0 = arith.constant 0 : index
    %c0_0 = arith.constant 0 : index
    %0 = vector.load %arg2[%c0, %c0_0] : memref<128x128xf32, #tpu.memory_space<vmem>>, vector<128x128xf32>
    %c0_1 = arith.constant 0 : index
    %c0_2 = arith.constant 0 : index
    %1 = vector.load %arg3[%c0_1, %c0_2] : memref<128x128xf32, #tpu.memory_space<vmem>>, vector<128x128xf32>
    %cst = arith.constant dense<0.000000e+00> : vector<128x128xf32>
    %2 = tpu.matmul %0, %1, %cst {dimension_numbers = #tpu.dot_dimension_numbers<[1], [0], [0], [1], [0, 0, 1, 1], [], []>} : vector<128x128xf32>, vector<128x128xf32>, vector<128x128xf32> -> vector<128x128xf32>
    %c0_3 = arith.constant 0 : index
    %c0_4 = arith.constant 0 : index
    %3 = vector.load %arg4[%c0_3, %c0_4] : memref<1x128xf32, #tpu.memory_space<vmem>>, vector<1x128xf32>
    %4 = vector.broadcast %3 : vector<1x128xf32> to vector<128x128xf32>
    %5 = arith.addf %2, %4 : vector<128x128xf32>
    %c0_5 = arith.constant 0 : index
    %c0_6 = arith.constant 0 : index
    %6 = vector.load %arg1[%c0_5, %c0_6] : memref<128x128xf32, #tpu.memory_space<vmem>>, vector<128x128xf32>
    %cst_7 = arith.constant dense<0.000000e+00> : vector<128x128xf32>
    %7 = tpu.matmul %6, %5, %cst_7 {dimension_numbers = #tpu.dot_dimension_numbers<[1], [0], [0], [1], [0, 0, 1, 1], [], []>} : vector<128x128xf32>, vector<128x128xf32>, vector<128x128xf32> -> vector<128x128xf32>
    %cst_8 = arith.constant 0.000000e+00 : f32
    %8 = vector.broadcast %cst_8 : f32 to vector<128x128xf32>
    %9 = arith.maximumf %7, %8 : vector<128x128xf32>
    %c0_9 = arith.constant 0 : index
    %c0_10 = arith.constant 0 : index
    %10 = vector.load %arg5[%c0_9, %c0_10] : memref<128x128xf32, #tpu.memory_space<vmem>>, vector<128x128xf32>
    %cst_11 = arith.constant dense<0.000000e+00> : vector<128x128xf32>
    %11 = tpu.matmul %9, %10, %cst_11 {dimension_numbers = #tpu.dot_dimension_numbers<[1], [0], [0], [1], [0, 0, 1, 1], [], []>} : vector<128x128xf32>, vector<128x128xf32>, vector<128x128xf32> -> vector<128x128xf32>
    %c0_12 = arith.constant 0 : index
    %c0_13 = arith.constant 0 : index
    %12 = vector.load %arg6[%c0_12, %c0_13] : memref<1x128xf32, #tpu.memory_space<vmem>>, vector<1x128xf32>
    %13 = vector.broadcast %12 : vector<1x128xf32> to vector<128x128xf32>
    %14 = arith.addf %11, %13 : vector<128x128xf32>
    %c0_14 = arith.constant 0 : index
    %c0_15 = arith.constant 0 : index
    %15 = vector.load %arg1[%c0_14, %c0_15] : memref<128x128xf32, #tpu.memory_space<vmem>>, vector<128x128xf32>
    %cst_16 = arith.constant dense<0.000000e+00> : vector<128x128xf32>
    %16 = tpu.matmul %15, %14, %cst_16 {dimension_numbers = #tpu.dot_dimension_numbers<[1], [0], [0], [1], [0, 0, 1, 1], [], []>} : vector<128x128xf32>, vector<128x128xf32>, vector<128x128xf32> -> vector<128x128xf32>
    %17 = tpu.iota {dimensions = array<i32: 1>} : vector<128x128xi32>
    %c4_i32 = arith.constant 4 : i32
    %18 = vector.broadcast %c4_i32 : i32 to vector<128x128xi32>
    %19 = arith.cmpi slt, %17, %18 : vector<128x128xi32>
    %cst_17 = arith.constant 0xFF800000 : f32
    %20 = vector.broadcast %cst_17 : f32 to vector<128x128xf32>
    %21 = arith.select %19, %16, %20 : vector<128x128xi1>, vector<128x128xf32>
    %cst_18 = arith.constant dense<0xFF800000> : vector<128xf32>
    %22 = vector.multi_reduction <maximumf>, %21, %cst_18 [1] : vector<128x128xf32> to vector<128xf32>
    %23 = vector.shape_cast %22 : vector<128xf32> to vector<128x1xf32>
    %24 = vector.broadcast %23 : vector<128x1xf32> to vector<128x128xf32>
    %25 = arith.subf %21, %24 : vector<128x128xf32>
    %26 = math.exp %25 : vector<128x128xf32>
    %cst_19 = arith.constant 0.000000e+00 : f32
    %27 = vector.broadcast %cst_19 : f32 to vector<128x128xf32>
    %28 = arith.select %19, %26, %27 : vector<128x128xi1>, vector<128x128xf32>
    %cst_20 = arith.constant dense<0.000000e+00> : vector<128xf32>
    %29 = vector.multi_reduction <add>, %28, %cst_20 [1] : vector<128x128xf32> to vector<128xf32>
    %30 = vector.shape_cast %29 : vector<128xf32> to vector<128x1xf32>
    %31 = math.log %30 : vector<128x1xf32>
    %32 = vector.broadcast %31 : vector<128x1xf32> to vector<128x128xf32>
    %33 = arith.subf %25, %32 : vector<128x128xf32>
    %cst_21 = arith.constant 0.000000e+00 : f32
    %34 = vector.broadcast %cst_21 : f32 to vector<128x128xf32>
    %35 = arith.select %19, %33, %34 : vector<128x128xi1>, vector<128x128xf32>
    %c0_22 = arith.constant 0 : index
    %c0_23 = arith.constant 0 : index
    %36 = vector.load %arg7[%c0_22, %c0_23] : memref<128x128xf32, #tpu.memory_space<vmem>>, vector<128x128xf32>
    tpu.vector_store %arg7[%c0_22, %c0_23], %35 {strides = array<i32>} : memref<128x128xf32, #tpu.memory_space<vmem>>, vector<128x128xf32>,
    return
  }
  func.func @transform_0(%arg0: i32) -> (i32, i32) {
    %c0_i32 = arith.constant 0 : i32
    %c0_i32_0 = arith.constant 0 : i32
    %c0_i32_1 = arith.constant 0 : i32
    return %c0_i32, %c0_i32_0 : i32, i32
  }
  func.func @transform_1(%arg0: i32) -> (i32, i32) {
    %c0_i32 = arith.constant 0 : i32
    %c0_i32_0 = arith.constant 0 : i32
    %c0_i32_1 = arith.constant 0 : i32
    return %c0_i32, %c0_i32_0 : i32, i32
  }
  func.func @transform_2(%arg0: i32) -> (i32, i32) {
    %c0_i32 = arith.constant 0 : i32
    %c0_i32_0 = arith.constant 0 : i32
    %c0_i32_1 = arith.constant 0 : i32
    return %c0_i32, %c0_i32_0 : i32, i32
  }
  func.func @transform_3(%arg0: i32) -> (i32, i32) {
    %c0_i32 = arith.constant 0 : i32
    %c0_i32_0 = arith.constant 0 : i32
    %c0_i32_1 = arith.constant 0 : i32
    return %c0_i32, %c0_i32_0 : i32, i32
  }
  func.func @transform_4(%arg0: i32) -> (i32, i32) {
    %c0_i32 = arith.constant 0 : i32
    %c0_i32_0 = arith.constant 0 : i32
    %c0_i32_1 = arith.constant 0 : i32
    return %c0_i32, %c0_i32_0 : i32, i32
  }
  func.func @transform_5(%arg0: i32) -> (i32, i32) {
    %c0_i32 = arith.constant 0 : i32
    %c0_i32_0 = arith.constant 0 : i32
    %c0_i32_1 = arith.constant 0 : i32
    return %c0_i32, %c0_i32_0 : i32, i32
  }
  func.func @transform_6(%arg0: i32) -> (i32, i32) {
    %c0_i32 = arith.constant 0 : i32
    %c0_i32_0 = arith.constant 0 : i32
    %c0_i32_1 = arith.constant 0 : i32
    return %c0_i32, %c0_i32_0 : i32, i32
  }
}

</mosaic_0001>

<llo_original>
// kernel: tpu_custom_call.1
$region0: #{tpu_custom_call.1}
  #allocation0 [shape = 'u32[]', space=smem, size = 0x4, offset = 0x4, fixed_abs, tag = 'smem constant byte address 0x4 - core index']
  #allocation1 [shape = 'u32[144,128]{1,0:T(1,128)}', space=vmem, size = 0x12000, scoped, tag = 'internal scratch']
  %s0 = inlined_call_operand.hbm [shape: f32[128,128], index: 0, kind: input, shape index: {}]
  %s1 = inlined_call_operand.hbm [shape: f32[128,128], index: 1, kind: input, shape index: {}]
  %s2 = inlined_call_operand.hbm [shape: f32[128,128], index: 2, kind: input, shape index: {}]
  %s3 = inlined_call_operand.vmem [shape: f32[1,128], index: 3, kind: input, shape index: {}]
  %s4 = inlined_call_operand.hbm [shape: f32[128,128], index: 4, kind: input, shape index: {}]
  %s5 = inlined_call_operand.vmem [shape: f32[1,128], index: 5, kind: input, shape index: {}]
  %s6 = inlined_call_operand.hbm [shape: f32[128,128], index: 6, kind: output, shape index: {}]
  %s7 = sld [smem:[#allocation0]]
  $region50: #{tpu_custom_call.1} parent=0
    _
  %s9 = ssub.s32 1, %s7
  %s10 = scalar_select 0, %s9, %s7
  $region1: #{tpu_custom_call.1} parent=0
    #allocation2 [shape = 'u8[65536]{0}', space=vmem, size = 0x10000, scoped, tag = 'input window, operand 0, single buffered']
    #allocation3 [shape = 's32[1]{0}', space=sflag, size = 0x4, scoped, tag = 'scoped memory for tpu_custom_call.1']
    #allocation4 [shape = 's32[1]{0}', space=sflag, size = 0x4, scoped, tag = 'scoped memory for tpu_custom_call.1']
    #allocation5 [shape = 'u8[65536]{0}', space=vmem, size = 0x10000, scoped, tag = 'input window, operand 1, single buffered']
    #allocation6 [shape = 's32[1]{0}', space=sflag, size = 0x4, scoped, tag = 'scoped memory for tpu_custom_call.1']
    #allocation7 [shape = 'u8[65536]{0}', space=vmem, size = 0x10000, scoped, tag = 'input window, operand 2, single buffered']
    #allocation8 [shape = 'u8[65536]{0}', space=vmem, size = 0x10000, scoped, tag = 'input window, operand 4, single buffered']
    #allocation9 [shape = 's32[1]{0}', space=sflag, size = 0x4, scoped, tag = 'scoped memory for tpu_custom_call.1']
    #allocation10 [shape = 'u8[65536]{0}', space=vmem, size = 0x10000, scoped, tag = 'output window, operand 0, single buffered']
    %11 = vsyncpa [#allocation3], 0
    %12 = vsyncpa [#allocation6], 0
    %13 = vsyncpa [#allocation9], 0
    %14 = vsyncpa [#allocation4], 0
    // Predicated region
    $region2: #{tpu_custom_call.1} parent=1 // pred_check
      _
    $region3: #{tpu_custom_call.1} parent=1 // pred_check_branch
      %16 = sbr.rel (0) target = $region5
    $region4: #{tpu_custom_call.1} parent=1 // pred_region
      %s18 = ssub.s32 2048, 2048
      %19 = vsyncadd [#allocation3], %s18
      %s20 = sshll.u32 [#allocation2], 4
      %s21 = int_to_ptr.vmem [resolvable:$true] %s20
      %26 = dma.hbm_to_vmem [thread:$0]  %s0, 2048, %s21, [#allocation3], 128, 128, 8
    $region5: #{tpu_custom_call.1} parent=1 // pred_fallthru
      _
    // Predicated region
    $region6: #{tpu_custom_call.1} parent=1 // pred_check
      _
    $region7: #{tpu_custom_call.1} parent=1 // pred_check_branch
      %28 = sbr.rel (0) target = $region9
    $region8: #{tpu_custom_call.1} parent=1 // pred_region
      %s30 = ssub.s32 2048, 2048
      %31 = vsyncadd [#allocation6], %s30
      %s32 = sshll.u32 [#allocation5], 4
      %s33 = int_to_ptr.vmem [resolvable:$true] %s32
      %38 = dma.hbm_to_vmem [thread:$0]  %s1, 2048, %s33, [#allocation6], 128, 128, 8
    $region9: #{tpu_custom_call.1} parent=1 // pred_fallthru
      _
    // Predicated region
    $region10: #{tpu_custom_call.1} parent=1 // pred_check
      _
    $region11: #{tpu_custom_call.1} parent=1 // pred_check_branch
      %40 = sbr.rel (0) target = $region13
    $region12: #{tpu_custom_call.1} parent=1 // pred_region
      %s42 = ssub.s32 2048, 2048
      %43 = vsyncadd [#allocation6], %s42
      %s44 = sshll.u32 [#allocation7], 4
      %s45 = int_to_ptr.vmem [resolvable:$true] %s44
      %50 = dma.hbm_to_vmem [thread:$0]  %s2, 2048, %s45, [#allocation6], 128, 128, 8
    $region13: #{tpu_custom_call.1} parent=1 // pred_fallthru
      _
    // Predicated region
    $region14: #{tpu_custom_call.1} parent=1 // pred_check
      _
    $region15: #{tpu_custom_call.1} parent=1 // pred_check_branch
      %52 = sbr.rel (0) target = $region17
    $region16: #{tpu_custom_call.1} parent=1 // pred_region
      _
    $region17: #{tpu_custom_call.1} parent=1 // pred_fallthru
      _
    // Predicated region
    $region18: #{tpu_custom_call.1} parent=1 // pred_check
      _
    $region19: #{tpu_custom_call.1} parent=1 // pred_check_branch
      %54 = sbr.rel (0) target = $region21
    $region20: #{tpu_custom_call.1} parent=1 // pred_region
      %s56 = ssub.s32 2048, 2048
      %57 = vsyncadd [#allocation9], %s56
      %s58 = sshll.u32 [#allocation8], 4
      %s59 = int_to_ptr.vmem [resolvable:$true] %s58
      %64 = dma.hbm_to_vmem [thread:$0]  %s4, 2048, %s59, [#allocation9], 128, 128, 8
    $region21: #{tpu_custom_call.1} parent=1 // pred_fallthru
      _
    // Predicated region
    $region22: #{tpu_custom_call.1} parent=1 // pred_check
      _
    $region23: #{tpu_custom_call.1} parent=1 // pred_check_branch
      %66 = sbr.rel (0) target = $region25
    $region24: #{tpu_custom_call.1} parent=1 // pred_region
      _
    $region25: #{tpu_custom_call.1} parent=1 // pred_fallthru
      _
    // Predicated region
    $region26: #{tpu_custom_call.1} parent=1 // pred_check
      _
    $region27: #{tpu_custom_call.1} parent=1 // pred_check_branch
      %68 = sbr.rel (0) target = $region29
    $region28: #{tpu_custom_call.1} parent=1 // pred_region
      %69 = dma.done [#allocation3], 2048
    $region29: #{tpu_custom_call.1} parent=1 // pred_fallthru
      _
    // Predicated region
    $region30: #{tpu_custom_call.1} parent=1 // pred_check
      _
    $region31: #{tpu_custom_call.1} parent=1 // pred_check_branch
      %71 = sbr.rel (0) target = $region33
    $region32: #{tpu_custom_call.1} parent=1 // pred_region
      %72 = dma.done [#allocation6], 2048
    $region33: #{tpu_custom_call.1} parent=1 // pred_fallthru
      _
    // Predicated region
    $region34: #{tpu_custom_call.1} parent=1 // pred_check
      _
    $region35: #{tpu_custom_call.1} parent=1 // pred_check_branch
      %74 = sbr.rel (0) target = $region37
    $region36: #{tpu_custom_call.1} parent=1 // pred_region
      %75 = dma.done [#allocation6], 2048
    $region37: #{tpu_custom_call.1} parent=1 // pred_fallthru
      _
    // Predicated region
    $region38: #{tpu_custom_call.1} parent=1 // pred_check
      _
    $region39: #{tpu_custom_call.1} parent=1 // pred_check_branch
      %77 = sbr.rel (0) target = $region41
    $region40: #{tpu_custom_call.1} parent=1 // pred_region
      %78 = dma.done [#allocation9], 2048
    $region41: #{tpu_custom_call.1} parent=1 // pred_fallthru
      _
    %v79 = vld [vmem:[#allocation5] sm:$0xff]
    %v80 = vld [vmem:[#allocation5 + $0x8] sm:$0xff]
    %v81 = vld [vmem:[#allocation5 + $0x10] sm:$0xff]
    %v82 = vld [vmem:[#allocation5 + $0x18] sm:$0xff]
    %v83 = vld [vmem:[#allocation5 + $0x20] sm:$0xff]
    %v84 = vld [vmem:[#allocation5 + $0x28] sm:$0xff]
    %v85 = vld [vmem:[#allocation5 + $0x30] sm:$0xff]
    %v86 = vld [vmem:[#allocation5 + $0x38] sm:$0xff]
    %v87 = vld [vmem:[#allocation5 + $0x40] sm:$0xff]
    %v88 = vld [vmem:[#allocation5 + $0x48] sm:$0xff]
    %v89 = vld [vmem:[#allocation5 + $0x50] sm:$0xff]
    %v90 = vld [vmem:[#allocation5 + $0x58] sm:$0xff]
    %v91 = vld [vmem:[#allocation5 + $0x60] sm:$0xff]
    %v92 = vld [vmem:[#allocation5 + $0x68] sm:$0xff]
    %v93 = vld [vmem:[#allocation5 + $0x70] sm:$0xff]
    %v94 = vld [vmem:[#allocation5 + $0x78] sm:$0xff]
    %v95 = vld [vmem:[#allocation7] sm:$0xff]
    %v96 = vld [vmem:[#allocation7 + $0x8] sm:$0xff]
    %v97 = vld [vmem:[#allocation7 + $0x10] sm:$0xff]
    %v98 = vld [vmem:[#allocation7 + $0x18] sm:$0xff]
    %v99 = vld [vmem:[#allocation7 + $0x20] sm:$0xff]
    %v100 = vld [vmem:[#allocation7 + $0x28] sm:$0xff]
    %v101 = vld [vmem:[#allocation7 + $0x30] sm:$0xff]
    %v102 = vld [vmem:[#allocation7 + $0x38] sm:$0xff]
    %v103 = vld [vmem:[#allocation7 + $0x40] sm:$0xff]
    %v104 = vld [vmem:[#allocation7 + $0x48] sm:$0xff]
    %v105 = vld [vmem:[#allocation7 + $0x50] sm:$0xff]
    %v106 = vld [vmem:[#allocation7 + $0x58] sm:$0xff]
    %v107 = vld [vmem:[#allocation7 + $0x60] sm:$0xff]
    %v108 = vld [vmem:[#allocation7 + $0x68] sm:$0xff]
    %v109 = vld [vmem:[#allocation7 + $0x70] sm:$0xff]
    %v110 = vld [vmem:[#allocation7 + $0x78] sm:$0xff]
    %v111 = vld [vmem:[%s3] sm:$0x1]
    %v113 = vlaneseq
    %v114 = vshrl.u32 %v113, 7
    %v115 = vsub.s32 0, %v114
    %v116 = vrot.slane %v111, %v115
    %118 = vmatprep.subr.mxu0 0.0
    %119 = vmatpush1.msra.mxu0 %v110
    %120 = vmatprep.subr.mxu0 0.0
    %121 = vmatpush1.msra.mxu0 %v109
    %122 = vmatprep.subr.mxu0 0.0
    %123 = vmatpush1.msra.mxu0 %v108
    %124 = vmatprep.subr.mxu0 0.0
    %125 = vmatpush1.msra.mxu0 %v107
    %126 = vmatprep.subr.mxu0 0.0
    %127 = vmatpush1.msra.mxu0 %v106
    %128 = vmatprep.subr.mxu0 0.0
    %129 = vmatpush1.msra.mxu0 %v105
    %130 = vmatprep.subr.mxu0 0.0
    %131 = vmatpush1.msra.mxu0 %v104
    %132 = vmatprep.subr.mxu0 0.0
    %133 = vmatpush1.msra.mxu0 %v103
    %134 = vmatprep.subr.mxu0 0.0
    %135 = vmatpush1.msra.mxu0 %v102
    %136 = vmatprep.subr.mxu0 0.0
    %137 = vmatpush1.msra.mxu0 %v101
    %138 = vmatprep.subr.mxu0 0.0
    %139 = vmatpush1.msra.mxu0 %v100
    %140 = vmatprep.subr.mxu0 0.0
    %141 = vmatpush1.msra.mxu0 %v99
    %142 = vmatprep.subr.mxu0 0.0
    %143 = vmatpush1.msra.mxu0 %v98
    %144 = vmatprep.subr.mxu0 0.0
    %145 = vmatpush1.msra.mxu0 %v97
    %146 = vmatprep.subr.mxu0 0.0
    %147 = vmatpush1.msra.mxu0 %v96
    %148 = vmatprep.subr.mxu0 0.0
    %149 = vmatpush1.msra.mxu0 %v95
    %150 = vmatprep.subr.mxu0 0.0
    %151 = vmatpush2.msra.mxu0 0.0
    %152 = vmatprep.subr.mxu0 0.0
    %153 = vmatpush2.msra.mxu0 0.0
    %154 = vmatprep.subr.mxu0 0.0
    %155 = vmatpush2.msra.mxu0 0.0
    %156 = vmatprep.subr.mxu0 0.0
    %157 = vmatpush2.msra.mxu0 0.0
    %158 = vmatprep.subr.mxu0 0.0
    %159 = vmatpush2.msra.mxu0 0.0
    %160 = vmatprep.subr.mxu0 0.0
    %161 = vmatpush2.msra.mxu0 0.0
    %162 = vmatprep.subr.mxu0 0.0
    %163 = vmatpush2.msra.mxu0 0.0
    %164 = vmatprep.subr.mxu0 0.0
    %165 = vmatpush2.msra.mxu0 0.0
    %166 = vmatprep.subr.mxu0 0.0
    %167 = vmatpush2.msra.mxu0 0.0
    %168 = vmatprep.subr.mxu0 0.0
    %169 = vmatpush2.msra.mxu0 0.0
    %170 = vmatprep.subr.mxu0 0.0
    %171 = vmatpush2.msra.mxu0 0.0
    %172 = vmatprep.subr.mxu0 0.0
    %173 = vmatpush2.msra.mxu0 0.0
    %174 = vmatprep.subr.mxu0 0.0
    %175 = vmatpush2.msra.mxu0 0.0
    %176 = vmatprep.subr.mxu0 0.0
    %177 = vmatpush2.msra.mxu0 0.0
    %178 = vmatprep.subr.mxu0 0.0
    %179 = vmatpush2.msra.mxu0 0.0
    %180 = vmatprep.subr.mxu0 0.0
    %181 = vmatpush2.msra.mxu0 0.0
    %182 = vmatprep.mubr.f32.mxu0 0.0
    %183 = vmatmul.mubr.f32.gmra.mxu0 %v79
    %v184 = vpop.f32.mrf.mxu0
    %v185 = vadd.f32 %v116, %v184
    %v186 = vpop.f32.mrf.mxu0
    %187 = vmatprep.mubr.f32.mxu0 0.0
    %188 = vmatmul.mubr.f32.gmra.mxu0 %v80
    %v189 = vpop.f32.mrf.mxu0
    %v190 = vadd.f32 %v116, %v189
    %v191 = vpop.f32.mrf.mxu0
    %192 = vmatprep.mubr.f32.mxu0 0.0
    %193 = vmatmul.mubr.f32.gmra.mxu0 %v81
    %v194 = vpop.f32.mrf.mxu0
    %v195 = vadd.f32 %v116, %v194
    %v196 = vpop.f32.mrf.mxu0
    %197 = vmatprep.mubr.f32.mxu0 0.0
    %198 = vmatmul.mubr.f32.gmra.mxu0 %v82
    %v199 = vpop.f32.mrf.mxu0
    %v200 = vadd.f32 %v116, %v199
    %v201 = vpop.f32.mrf.mxu0
    %202 = vmatprep.mubr.f32.mxu0 0.0
    %203 = vmatmul.mubr.f32.gmra.mxu0 %v83
    %v204 = vpop.f32.mrf.mxu0
    %v205 = vadd.f32 %v116, %v204
    %v206 = vpop.f32.mrf.mxu0
    %207 = vmatprep.mubr.f32.mxu0 0.0
    %208 = vmatmul.mubr.f32.gmra.mxu0 %v84
    %v209 = vpop.f32.mrf.mxu0
    %v210 = vadd.f32 %v116, %v209
    %v211 = vpop.f32.mrf.mxu0
    %212 = vmatprep.mubr.f32.mxu0 0.0
    %213 = vmatmul.mubr.f32.gmra.mxu0 %v85
    %v214 = vpop.f32.mrf.mxu0
    %v215 = vadd.f32 %v116, %v214
    %v216 = vpop.f32.mrf.mxu0
    %217 = vmatprep.mubr.f32.mxu0 0.0
    %218 = vmatmul.mubr.f32.gmra.mxu0 %v86
    %v219 = vpop.f32.mrf.mxu0
    %v220 = vadd.f32 %v116, %v219
    %v221 = vpop.f32.mrf.mxu0
    %222 = vmatprep.mubr.f32.mxu0 0.0
    %223 = vmatmul.mubr.f32.gmra.mxu0 %v87
    %v224 = vpop.f32.mrf.mxu0
    %v225 = vadd.f32 %v116, %v224
    %v226 = vpop.f32.mrf.mxu0
    %227 = vmatprep.mubr.f32.mxu0 0.0
    %228 = vmatmul.mubr.f32.gmra.mxu0 %v88
    %v229 = vpop.f32.mrf.mxu0
    %v230 = vadd.f32 %v116, %v229
    %v231 = vpop.f32.mrf.mxu0
    %232 = vmatprep.mubr.f32.mxu0 0.0
    %233 = vmatmul.mubr.f32.gmra.mxu0 %v89
    %v234 = vpop.f32.mrf.mxu0
    %v235 = vadd.f32 %v116, %v234
    %v236 = vpop.f32.mrf.mxu0
    %237 = vmatprep.mubr.f32.mxu0 0.0
    %238 = vmatmul.mubr.f32.gmra.mxu0 %v90
    %v239 = vpop.f32.mrf.mxu0
    %v240 = vadd.f32 %v116, %v239
    %v241 = vpop.f32.mrf.mxu0
    %242 = vmatprep.mubr.f32.mxu0 0.0
    %243 = vmatmul.mubr.f32.gmra.mxu0 %v91
    %v244 = vpop.f32.mrf.mxu0
    %v245 = vadd.f32 %v116, %v244
    %v246 = vpop.f32.mrf.mxu0
    %247 = vmatprep.mubr.f32.mxu0 0.0
    %248 = vmatmul.mubr.f32.gmra.mxu0 %v92
    %v249 = vpop.f32.mrf.mxu0
    %v250 = vadd.f32 %v116, %v249
    %v251 = vpop.f32.mrf.mxu0
    %252 = vmatprep.mubr.f32.mxu0 0.0
    %253 = vmatmul.mubr.f32.gmra.mxu0 %v93
    %v254 = vpop.f32.mrf.mxu0
    %v255 = vadd.f32 %v116, %v254
    %v256 = vpop.f32.mrf.mxu0
    %257 = vmatprep.mubr.f32.mxu0 0.0
    %258 = vmatmul.mubr.f32.gmra.mxu0 %v94
    %v259 = vpop.f32.mrf.mxu0
    %v260 = vadd.f32 %v116, %v259
    %v261 = vpop.f32.mrf.mxu0
    %262 = vdwg.mxu0
    %v263 = vld [vmem:[#allocation2] sm:$0xff]
    %v264 = vld [vmem:[#allocation2 + $0x8] sm:$0xff]
    %v265 = vld [vmem:[#allocation2 + $0x10] sm:$0xff]
    %v266 = vld [vmem:[#allocation2 + $0x18] sm:$0xff]
    %v267 = vld [vmem:[#allocation2 + $0x20] sm:$0xff]
    %v268 = vld [vmem:[#allocation2 + $0x28] sm:$0xff]
    %v269 = vld [vmem:[#allocation2 + $0x30] sm:$0xff]
    %v270 = vld [vmem:[#allocation2 + $0x38] sm:$0xff]
    %v271 = vld [vmem:[#allocation2 + $0x40] sm:$0xff]
    %v272 = vld [vmem:[#allocation2 + $0x48] sm:$0xff]
    %v273 = vld [vmem:[#allocation2 + $0x50] sm:$0xff]
    %v274 = vld [vmem:[#allocation2 + $0x58] sm:$0xff]
    %v275 = vld [vmem:[#allocation2 + $0x60] sm:$0xff]
    %v276 = vld [vmem:[#allocation2 + $0x68] sm:$0xff]
    %v277 = vld [vmem:[#allocation2 + $0x70] sm:$0xff]
    %v278 = vld [vmem:[#allocation2 + $0x78] sm:$0xff]
    %279 = vmatprep.subr.mxu0 0.0
    %280 = vmatpush1.msra.mxu0 %v260
    %281 = vmatprep.subr.mxu0 0.0
    %282 = vmatpush1.msra.mxu0 %v255
    %283 = vmatprep.subr.mxu0 0.0
    %284 = vmatpush1.msra.mxu0 %v250
    %285 = vmatprep.subr.mxu0 0.0
    %286 = vmatpush1.msra.mxu0 %v245
    %287 = vmatprep.subr.mxu0 0.0
    %288 = vmatpush1.msra.mxu0 %v240
    %289 = vmatprep.subr.mxu0 0.0
    %290 = vmatpush1.msra.mxu0 %v235
    %291 = vmatprep.subr.mxu0 0.0
    %292 = vmatpush1.msra.mxu0 %v230
    %293 = vmatprep.subr.mxu0 0.0
    %294 = vmatpush1.msra.mxu0 %v225
    %295 = vmatprep.subr.mxu0 0.0
    %296 = vmatpush1.msra.mxu0 %v220
    %297 = vmatprep.subr.mxu0 0.0
    %298 = vmatpush1.msra.mxu0 %v215
    %299 = vmatprep.subr.mxu0 0.0
    %300 = vmatpush1.msra.mxu0 %v210
    %301 = vmatprep.subr.mxu0 0.0
    %302 = vmatpush1.msra.mxu0 %v205
    %303 = vmatprep.subr.mxu0 0.0
    %304 = vmatpush1.msra.mxu0 %v200
    %305 = vmatprep.subr.mxu0 0.0
    %306 = vmatpush1.msra.mxu0 %v195
    %307 = vmatprep.subr.mxu0 0.0
    %308 = vmatpush1.msra.mxu0 %v190
    %309 = vmatprep.subr.mxu0 0.0
    %310 = vmatpush1.msra.mxu0 %v185
    %311 = vmatprep.subr.mxu0 0.0
    %312 = vmatpush2.msra.mxu0 0.0
    %313 = vmatprep.subr.mxu0 0.0
    %314 = vmatpush2.msra.mxu0 0.0
    %315 = vmatprep.subr.mxu0 0.0
    %316 = vmatpush2.msra.mxu0 0.0
    %317 = vmatprep.subr.mxu0 0.0
    %318 = vmatpush2.msra.mxu0 0.0
    %319 = vmatprep.subr.mxu0 0.0
    %320 = vmatpush2.msra.mxu0 0.0
    %321 = vmatprep.subr.mxu0 0.0
    %322 = vmatpush2.msra.mxu0 0.0
    %323 = vmatprep.subr.mxu0 0.0
    %324 = vmatpush2.msra.mxu0 0.0
    %325 = vmatprep.subr.mxu0 0.0
    %326 = vmatpush2.msra.mxu0 0.0
    %327 = vmatprep.subr.mxu0 0.0
    %328 = vmatpush2.msra.mxu0 0.0
    %329 = vmatprep.subr.mxu0 0.0
    %330 = vmatpush2.msra.mxu0 0.0
    %331 = vmatprep.subr.mxu0 0.0
    %332 = vmatpush2.msra.mxu0 0.0
    %333 = vmatprep.subr.mxu0 0.0
    %334 = vmatpush2.msra.mxu0 0.0
    %335 = vmatprep.subr.mxu0 0.0
    %336 = vmatpush2.msra.mxu0 0.0
    %337 = vmatprep.subr.mxu0 0.0
    %338 = vmatpush2.msra.mxu0 0.0
    %339 = vmatprep.subr.mxu0 0.0
    %340 = vmatpush2.msra.mxu0 0.0
    %341 = vmatprep.subr.mxu0 0.0
    %342 = vmatpush2.msra.mxu0 0.0
    %343 = vmatprep.mubr.f32.mxu0 0.0
    %344 = vmatmul.mubr.f32.gmra.mxu0 %v263
    %v345 = vpop.f32.mrf.mxu0
    %v346 = vadd.f32 0.0, %v345
    %v347 = vpop.f32.mrf.mxu0
    %348 = vmatprep.mubr.f32.mxu0 0.0
    %349 = vmatmul.mubr.f32.gmra.mxu0 %v264
    %v350 = vpop.f32.mrf.mxu0
    %v351 = vadd.f32 0.0, %v350
    %v352 = vpop.f32.mrf.mxu0
    %353 = vmatprep.mubr.f32.mxu0 0.0
    %354 = vmatmul.mubr.f32.gmra.mxu0 %v265
    %v355 = vpop.f32.mrf.mxu0
    %v356 = vadd.f32 0.0, %v355
    %v357 = vpop.f32.mrf.mxu0
    %358 = vmatprep.mubr.f32.mxu0 0.0
    %359 = vmatmul.mubr.f32.gmra.mxu0 %v266
    %v360 = vpop.f32.mrf.mxu0
    %v361 = vadd.f32 0.0, %v360
    %v362 = vpop.f32.mrf.mxu0
    %363 = vmatprep.mubr.f32.mxu0 0.0
    %364 = vmatmul.mubr.f32.gmra.mxu0 %v267
    %v365 = vpop.f32.mrf.mxu0
    %v366 = vadd.f32 0.0, %v365
    %v367 = vpop.f32.mrf.mxu0
    %368 = vmatprep.mubr.f32.mxu0 0.0
    %369 = vmatmul.mubr.f32.gmra.mxu0 %v268
    %v370 = vpop.f32.mrf.mxu0
    %v371 = vadd.f32 0.0, %v370
    %v372 = vpop.f32.mrf.mxu0
    %373 = vmatprep.mubr.f32.mxu0 0.0
    %374 = vmatmul.mubr.f32.gmra.mxu0 %v269
    %v375 = vpop.f32.mrf.mxu0
    %v376 = vadd.f32 0.0, %v375
    %v377 = vpop.f32.mrf.mxu0
    %378 = vmatprep.mubr.f32.mxu0 0.0
    %379 = vmatmul.mubr.f32.gmra.mxu0 %v270
    %v380 = vpop.f32.mrf.mxu0
    %v381 = vadd.f32 0.0, %v380
    %v382 = vpop.f32.mrf.mxu0
    %383 = vmatprep.mubr.f32.mxu0 0.0
    %384 = vmatmul.mubr.f32.gmra.mxu0 %v271
    %v385 = vpop.f32.mrf.mxu0
    %v386 = vadd.f32 0.0, %v385
    %v387 = vpop.f32.mrf.mxu0
    %388 = vmatprep.mubr.f32.mxu0 0.0
    %389 = vmatmul.mubr.f32.gmra.mxu0 %v272
    %v390 = vpop.f32.mrf.mxu0
    %v391 = vadd.f32 0.0, %v390
    %v392 = vpop.f32.mrf.mxu0
    %393 = vmatprep.mubr.f32.mxu0 0.0
    %394 = vmatmul.mubr.f32.gmra.mxu0 %v273
    %v395 = vpop.f32.mrf.mxu0
    %v396 = vadd.f32 0.0, %v395
    %v397 = vpop.f32.mrf.mxu0
    %398 = vmatprep.mubr.f32.mxu0 0.0
    %399 = vmatmul.mubr.f32.gmra.mxu0 %v274
    %v400 = vpop.f32.mrf.mxu0
    %v401 = vadd.f32 0.0, %v400
    %v402 = vpop.f32.mrf.mxu0
    %403 = vmatprep.mubr.f32.mxu0 0.0
    %404 = vmatmul.mubr.f32.gmra.mxu0 %v275
    %v405 = vpop.f32.mrf.mxu0
    %v406 = vadd.f32 0.0, %v405
    %v407 = vpop.f32.mrf.mxu0
    %408 = vmatprep.mubr.f32.mxu0 0.0
    %409 = vmatmul.mubr.f32.gmra.mxu0 %v276
    %v410 = vpop.f32.mrf.mxu0
    %v411 = vadd.f32 0.0, %v410
    %v412 = vpop.f32.mrf.mxu0
    %413 = vmatprep.mubr.f32.mxu0 0.0
    %414 = vmatmul.mubr.f32.gmra.mxu0 %v277
    %v415 = vpop.f32.mrf.mxu0
    %v416 = vadd.f32 0.0, %v415
    %v417 = vpop.f32.mrf.mxu0
    %418 = vmatprep.mubr.f32.mxu0 0.0
    %419 = vmatmul.mubr.f32.gmra.mxu0 %v278
    %v420 = vpop.f32.mrf.mxu0
    %v421 = vadd.f32 0.0, %v420
    %v422 = vpop.f32.mrf.mxu0
    %423 = vdwg.mxu0
    %v424 = vmax.f32 %v346, 0.0
    %v425 = vmax.f32 %v351, 0.0
    %v426 = vmax.f32 %v356, 0.0
    %v427 = vmax.f32 %v361, 0.0
    %v428 = vmax.f32 %v366, 0.0
    %v429 = vmax.f32 %v371, 0.0
    %v430 = vmax.f32 %v376, 0.0
    %v431 = vmax.f32 %v381, 0.0
    %v432 = vmax.f32 %v386, 0.0
    %v433 = vmax.f32 %v391, 0.0
    %v434 = vmax.f32 %v396, 0.0
    %v435 = vmax.f32 %v401, 0.0
    %v436 = vmax.f32 %v406, 0.0
    %v437 = vmax.f32 %v411, 0.0
    %v438 = vmax.f32 %v416, 0.0
    %v439 = vmax.f32 %v421, 0.0
    %v440 = vld [vmem:[#allocation8] sm:$0xff]
    %v441 = vld [vmem:[#allocation8 + $0x8] sm:$0xff]
    %v442 = vld [vmem:[#allocation8 + $0x10] sm:$0xff]
    %v443 = vld [vmem:[#allocation8 + $0x18] sm:$0xff]
    %v444 = vld [vmem:[#allocation8 + $0x20] sm:$0xff]
    %v445 = vld [vmem:[#allocation8 + $0x28] sm:$0xff]
    %v446 = vld [vmem:[#allocation8 + $0x30] sm:$0xff]
    %v447 = vld [vmem:[#allocation8 + $0x38] sm:$0xff]
    %v448 = vld [vmem:[#allocation8 + $0x40] sm:$0xff]
    %v449 = vld [vmem:[#allocation8 + $0x48] sm:$0xff]
    %v450 = vld [vmem:[#allocation8 + $0x50] sm:$0xff]
    %v451 = vld [vmem:[#allocation8 + $0x58] sm:$0xff]
    %v452 = vld [vmem:[#allocation8 + $0x60] sm:$0xff]
    %v453 = vld [vmem:[#allocation8 + $0x68] sm:$0xff]
    %v454 = vld [vmem:[#allocation8 + $0x70] sm:$0xff]
    %v455 = vld [vmem:[#allocation8 + $0x78] sm:$0xff]
    %v456 = vld [vmem:[%s5] sm:$0x1]
    %v458 = vlaneseq
    %v459 = vshrl.u32 %v458, 7
    %v460 = vsub.s32 0, %v459
    %v461 = vrot.slane %v456, %v460
    %463 = vmatprep.subr.mxu0 0.0
    %464 = vmatpush1.msra.mxu0 %v455
    %465 = vmatprep.subr.mxu0 0.0
    %466 = vmatpush1.msra.mxu0 %v454
    %467 = vmatprep.subr.mxu0 0.0
    %468 = vmatpush1.msra.mxu0 %v453
    %469 = vmatprep.subr.mxu0 0.0
    %470 = vmatpush1.msra.mxu0 %v452
    %471 = vmatprep.subr.mxu0 0.0
    %472 = vmatpush1.msra.mxu0 %v451
    %473 = vmatprep.subr.mxu0 0.0
    %474 = vmatpush1.msra.mxu0 %v450
    %475 = vmatprep.subr.mxu0 0.0
    %476 = vmatpush1.msra.mxu0 %v449
    %477 = vmatprep.subr.mxu0 0.0
    %478 = vmatpush1.msra.mxu0 %v448
    %479 = vmatprep.subr.mxu0 0.0
    %480 = vmatpush1.msra.mxu0 %v447
    %481 = vmatprep.subr.mxu0 0.0
    %482 = vmatpush1.msra.mxu0 %v446
    %483 = vmatprep.subr.mxu0 0.0
    %484 = vmatpush1.msra.mxu0 %v445
    %485 = vmatprep.subr.mxu0 0.0
    %486 = vmatpush1.msra.mxu0 %v444
    %487 = vmatprep.subr.mxu0 0.0
    %488 = vmatpush1.msra.mxu0 %v443
    %489 = vmatprep.subr.mxu0 0.0
    %490 = vmatpush1.msra.mxu0 %v442
    %491 = vmatprep.subr.mxu0 0.0
    %492 = vmatpush1.msra.mxu0 %v441
    %493 = vmatprep.subr.mxu0 0.0
    %494 = vmatpush1.msra.mxu0 %v440
    %495 = vmatprep.subr.mxu0 0.0
    %496 = vmatpush2.msra.mxu0 0.0
    %497 = vmatprep.subr.mxu0 0.0
    %498 = vmatpush2.msra.mxu0 0.0
    %499 = vmatprep.subr.mxu0 0.0
    %500 = vmatpush2.msra.mxu0 0.0
    %501 = vmatprep.subr.mxu0 0.0
    %502 = vmatpush2.msra.mxu0 0.0
    %503 = vmatprep.subr.mxu0 0.0
    %504 = vmatpush2.msra.mxu0 0.0
    %505 = vmatprep.subr.mxu0 0.0
    %506 = vmatpush2.msra.mxu0 0.0
    %507 = vmatprep.subr.mxu0 0.0
    %508 = vmatpush2.msra.mxu0 0.0
    %509 = vmatprep.subr.mxu0 0.0
    %510 = vmatpush2.msra.mxu0 0.0
    %511 = vmatprep.subr.mxu0 0.0
    %512 = vmatpush2.msra.mxu0 0.0
    %513 = vmatprep.subr.mxu0 0.0
    %514 = vmatpush2.msra.mxu0 0.0
    %515 = vmatprep.subr.mxu0 0.0
    %516 = vmatpush2.msra.mxu0 0.0
    %517 = vmatprep.subr.mxu0 0.0
    %518 = vmatpush2.msra.mxu0 0.0
    %519 = vmatprep.subr.mxu0 0.0
    %520 = vmatpush2.msra.mxu0 0.0
    %521 = vmatprep.subr.mxu0 0.0
    %522 = vmatpush2.msra.mxu0 0.0
    %523 = vmatprep.subr.mxu0 0.0
    %524 = vmatpush2.msra.mxu0 0.0
    %525 = vmatprep.subr.mxu0 0.0
    %526 = vmatpush2.msra.mxu0 0.0
    %527 = vmatprep.mubr.f32.mxu0 0.0
    %528 = vmatmul.mubr.f32.gmra.mxu0 %v424
    %v529 = vpop.f32.mrf.mxu0
    %v530 = vadd.f32 %v461, %v529
    %v531 = vpop.f32.mrf.mxu0
    %532 = vmatprep.mubr.f32.mxu0 0.0
    %533 = vmatmul.mubr.f32.gmra.mxu0 %v425
    %v534 = vpop.f32.mrf.mxu0
    %v535 = vadd.f32 %v461, %v534
    %v536 = vpop.f32.mrf.mxu0
    %537 = vmatprep.mubr.f32.mxu0 0.0
    %538 = vmatmul.mubr.f32.gmra.mxu0 %v426
    %v539 = vpop.f32.mrf.mxu0
    %v540 = vadd.f32 %v461, %v539
    %v541 = vpop.f32.mrf.mxu0
    %542 = vmatprep.mubr.f32.mxu0 0.0
    %543 = vmatmul.mubr.f32.gmra.mxu0 %v427
    %v544 = vpop.f32.mrf.mxu0
    %v545 = vadd.f32 %v461, %v544
    %v546 = vpop.f32.mrf.mxu0
    %547 = vmatprep.mubr.f32.mxu0 0.0
    %548 = vmatmul.mubr.f32.gmra.mxu0 %v428
    %v549 = vpop.f32.mrf.mxu0
    %v550 = vadd.f32 %v461, %v549
    %v551 = vpop.f32.mrf.mxu0
    %552 = vmatprep.mubr.f32.mxu0 0.0
    %553 = vmatmul.mubr.f32.gmra.mxu0 %v429
    %v554 = vpop.f32.mrf.mxu0
    %v555 = vadd.f32 %v461, %v554
    %v556 = vpop.f32.mrf.mxu0
    %557 = vmatprep.mubr.f32.mxu0 0.0
    %558 = vmatmul.mubr.f32.gmra.mxu0 %v430
    %v559 = vpop.f32.mrf.mxu0
    %v560 = vadd.f32 %v461, %v559
    %v561 = vpop.f32.mrf.mxu0
    %562 = vmatprep.mubr.f32.mxu0 0.0
    %563 = vmatmul.mubr.f32.gmra.mxu0 %v431
    %v564 = vpop.f32.mrf.mxu0
    %v565 = vadd.f32 %v461, %v564
    %v566 = vpop.f32.mrf.mxu0
    %567 = vmatprep.mubr.f32.mxu0 0.0
    %568 = vmatmul.mubr.f32.gmra.mxu0 %v432
    %v569 = vpop.f32.mrf.mxu0
    %v570 = vadd.f32 %v461, %v569
    %v571 = vpop.f32.mrf.mxu0
    %572 = vmatprep.mubr.f32.mxu0 0.0
    %573 = vmatmul.mubr.f32.gmra.mxu0 %v433
    %v574 = vpop.f32.mrf.mxu0
    %v575 = vadd.f32 %v461, %v574
    %v576 = vpop.f32.mrf.mxu0
    %577 = vmatprep.mubr.f32.mxu0 0.0
    %578 = vmatmul.mubr.f32.gmra.mxu0 %v434
    %v579 = vpop.f32.mrf.mxu0
    %v580 = vadd.f32 %v461, %v579
    %v581 = vpop.f32.mrf.mxu0
    %582 = vmatprep.mubr.f32.mxu0 0.0
    %583 = vmatmul.mubr.f32.gmra.mxu0 %v435
    %v584 = vpop.f32.mrf.mxu0
    %v585 = vadd.f32 %v461, %v584
    %v586 = vpop.f32.mrf.mxu0
    %587 = vmatprep.mubr.f32.mxu0 0.0
    %588 = vmatmul.mubr.f32.gmra.mxu0 %v436
    %v589 = vpop.f32.mrf.mxu0
    %v590 = vadd.f32 %v461, %v589
    %v591 = vpop.f32.mrf.mxu0
    %592 = vmatprep.mubr.f32.mxu0 0.0
    %593 = vmatmul.mubr.f32.gmra.mxu0 %v437
    %v594 = vpop.f32.mrf.mxu0
    %v595 = vadd.f32 %v461, %v594
    %v596 = vpop.f32.mrf.mxu0
    %597 = vmatprep.mubr.f32.mxu0 0.0
    %598 = vmatmul.mubr.f32.gmra.mxu0 %v438
    %v599 = vpop.f32.mrf.mxu0
    %v600 = vadd.f32 %v461, %v599
    %v601 = vpop.f32.mrf.mxu0
    %602 = vmatprep.mubr.f32.mxu0 0.0
    %603 = vmatmul.mubr.f32.gmra.mxu0 %v439
    %v604 = vpop.f32.mrf.mxu0
    %v605 = vadd.f32 %v461, %v604
    %v606 = vpop.f32.mrf.mxu0
    %607 = vdwg.mxu0
    %608 = vmatprep.subr.mxu0 0.0
    %609 = vmatpush1.msra.mxu0 %v605
    %610 = vmatprep.subr.mxu0 0.0
    %611 = vmatpush1.msra.mxu0 %v600
    %612 = vmatprep.subr.mxu0 0.0
    %613 = vmatpush1.msra.mxu0 %v595
    %614 = vmatprep.subr.mxu0 0.0
    %615 = vmatpush1.msra.mxu0 %v590
    %616 = vmatprep.subr.mxu0 0.0
    %617 = vmatpush1.msra.mxu0 %v585
    %618 = vmatprep.subr.mxu0 0.0
    %619 = vmatpush1.msra.mxu0 %v580
    %620 = vmatprep.subr.mxu0 0.0
    %621 = vmatpush1.msra.mxu0 %v575
    %622 = vmatprep.subr.mxu0 0.0
    %623 = vmatpush1.msra.mxu0 %v570
    %624 = vmatprep.subr.mxu0 0.0
    %625 = vmatpush1.msra.mxu0 %v565
    %626 = vmatprep.subr.mxu0 0.0
    %627 = vmatpush1.msra.mxu0 %v560
    %628 = vmatprep.subr.mxu0 0.0
    %629 = vmatpush1.msra.mxu0 %v555
    %630 = vmatprep.subr.mxu0 0.0
    %631 = vmatpush1.msra.mxu0 %v550
    %632 = vmatprep.subr.mxu0 0.0
    %633 = vmatpush1.msra.mxu0 %v545
    %634 = vmatprep.subr.mxu0 0.0
    %635 = vmatpush1.msra.mxu0 %v540
    %636 = vmatprep.subr.mxu0 0.0
    %637 = vmatpush1.msra.mxu0 %v535
    %638 = vmatprep.subr.mxu0 0.0
    %639 = vmatpush1.msra.mxu0 %v530
    %640 = vmatprep.subr.mxu0 0.0
    %641 = vmatpush2.msra.mxu0 0.0
    %642 = vmatprep.subr.mxu0 0.0
    %643 = vmatpush2.msra.mxu0 0.0
    %644 = vmatprep.subr.mxu0 0.0
    %645 = vmatpush2.msra.mxu0 0.0
    %646 = vmatprep.subr.mxu0 0.0
    %647 = vmatpush2.msra.mxu0 0.0
    %648 = vmatprep.subr.mxu0 0.0
    %649 = vmatpush2.msra.mxu0 0.0
    %650 = vmatprep.subr.mxu0 0.0
    %651 = vmatpush2.msra.mxu0 0.0
    %652 = vmatprep.subr.mxu0 0.0
    %653 = vmatpush2.msra.mxu0 0.0
    %654 = vmatprep.subr.mxu0 0.0
    %655 = vmatpush2.msra.mxu0 0.0
    %656 = vmatprep.subr.mxu0 0.0
    %657 = vmatpush2.msra.mxu0 0.0
    %658 = vmatprep.subr.mxu0 0.0
    %659 = vmatpush2.msra.mxu0 0.0
    %660 = vmatprep.subr.mxu0 0.0
    %661 = vmatpush2.msra.mxu0 0.0
    %662 = vmatprep.subr.mxu0 0.0
    %663 = vmatpush2.msra.mxu0 0.0
    %664 = vmatprep.subr.mxu0 0.0
    %665 = vmatpush2.msra.mxu0 0.0
    %666 = vmatprep.subr.mxu0 0.0
    %667 = vmatpush2.msra.mxu0 0.0
    %668 = vmatprep.subr.mxu0 0.0
    %669 = vmatpush2.msra.mxu0 0.0
    %670 = vmatprep.subr.mxu0 0.0
    %671 = vmatpush2.msra.mxu0 0.0
    %672 = vmatprep.mubr.f32.mxu0 0.0
    %673 = vmatmul.mubr.f32.gmra.mxu0 %v263
    %v674 = vpop.f32.mrf.mxu0
    %v675 = vadd.f32 0.0, %v674
    %v676 = vpop.f32.mrf.mxu0
    %677 = vmatprep.mubr.f32.mxu0 0.0
    %678 = vmatmul.mubr.f32.gmra.mxu0 %v264
    %v679 = vpop.f32.mrf.mxu0
    %v680 = vadd.f32 0.0, %v679
    %v681 = vpop.f32.mrf.mxu0
    %682 = vmatprep.mubr.f32.mxu0 0.0
    %683 = vmatmul.mubr.f32.gmra.mxu0 %v265
    %v684 = vpop.f32.mrf.mxu0
    %v685 = vadd.f32 0.0, %v684
    %v686 = vpop.f32.mrf.mxu0
    %687 = vmatprep.mubr.f32.mxu0 0.0
    %688 = vmatmul.mubr.f32.gmra.mxu0 %v266
    %v689 = vpop.f32.mrf.mxu0
    %v690 = vadd.f32 0.0, %v689
    %v691 = vpop.f32.mrf.mxu0
    %692 = vmatprep.mubr.f32.mxu0 0.0
    %693 = vmatmul.mubr.f32.gmra.mxu0 %v267
    %v694 = vpop.f32.mrf.mxu0
    %v695 = vadd.f32 0.0, %v694
    %v696 = vpop.f32.mrf.mxu0
    %697 = vmatprep.mubr.f32.mxu0 0.0
    %698 = vmatmul.mubr.f32.gmra.mxu0 %v268
    %v699 = vpop.f32.mrf.mxu0
    %v700 = vadd.f32 0.0, %v699
    %v701 = vpop.f32.mrf.mxu0
    %702 = vmatprep.mubr.f32.mxu0 0.0
    %703 = vmatmul.mubr.f32.gmra.mxu0 %v269
    %v704 = vpop.f32.mrf.mxu0
    %v705 = vadd.f32 0.0, %v704
    %v706 = vpop.f32.mrf.mxu0
    %707 = vmatprep.mubr.f32.mxu0 0.0
    %708 = vmatmul.mubr.f32.gmra.mxu0 %v270
    %v709 = vpop.f32.mrf.mxu0
    %v710 = vadd.f32 0.0, %v709
    %v711 = vpop.f32.mrf.mxu0
    %712 = vmatprep.mubr.f32.mxu0 0.0
    %713 = vmatmul.mubr.f32.gmra.mxu0 %v271
    %v714 = vpop.f32.mrf.mxu0
    %v715 = vadd.f32 0.0, %v714
    %v716 = vpop.f32.mrf.mxu0
    %717 = vmatprep.mubr.f32.mxu0 0.0
    %718 = vmatmul.mubr.f32.gmra.mxu0 %v272
    %v719 = vpop.f32.mrf.mxu0
    %v720 = vadd.f32 0.0, %v719
    %v721 = vpop.f32.mrf.mxu0
    %722 = vmatprep.mubr.f32.mxu0 0.0
    %723 = vmatmul.mubr.f32.gmra.mxu0 %v273
    %v724 = vpop.f32.mrf.mxu0
    %v725 = vadd.f32 0.0, %v724
    %v726 = vpop.f32.mrf.mxu0
    %727 = vmatprep.mubr.f32.mxu0 0.0
    %728 = vmatmul.mubr.f32.gmra.mxu0 %v274
    %v729 = vpop.f32.mrf.mxu0
    %v730 = vadd.f32 0.0, %v729
    %v731 = vpop.f32.mrf.mxu0
    %732 = vmatprep.mubr.f32.mxu0 0.0
    %733 = vmatmul.mubr.f32.gmra.mxu0 %v275
    %v734 = vpop.f32.mrf.mxu0
    %v735 = vadd.f32 0.0, %v734
    %v736 = vpop.f32.mrf.mxu0
    %737 = vmatprep.mubr.f32.mxu0 0.0
    %738 = vmatmul.mubr.f32.gmra.mxu0 %v276
    %v739 = vpop.f32.mrf.mxu0
    %v740 = vadd.f32 0.0, %v739
    %v741 = vpop.f32.mrf.mxu0
    %742 = vmatprep.mubr.f32.mxu0 0.0
    %743 = vmatmul.mubr.f32.gmra.mxu0 %v277
    %v744 = vpop.f32.mrf.mxu0
    %v745 = vadd.f32 0.0, %v744
    %v746 = vpop.f32.mrf.mxu0
    %747 = vmatprep.mubr.f32.mxu0 0.0
    %748 = vmatmul.mubr.f32.gmra.mxu0 %v278
    %v749 = vpop.f32.mrf.mxu0
    %v750 = vadd.f32 0.0, %v749
    %v751 = vpop.f32.mrf.mxu0
    %752 = vdwg.mxu0
    %v753 = vlaneseq
    %v754 = vand.u32 %v753, 127
    %vm755 = vcmp.lt.s32.totalorder %v754, 4
    %v756 = vsel %vm755, %v675, -inf
    %v757 = vsel %vm755, %v680, -inf
    %v758 = vsel %vm755, %v685, -inf
    %v759 = vsel %vm755, %v690, -inf
    %v760 = vsel %vm755, %v695, -inf
    %v761 = vsel %vm755, %v700, -inf
    %v762 = vsel %vm755, %v705, -inf
    %v763 = vsel %vm755, %v710, -inf
    %v764 = vsel %vm755, %v715, -inf
    %v765 = vsel %vm755, %v720, -inf
    %v766 = vsel %vm755, %v725, -inf
    %v767 = vsel %vm755, %v730, -inf
    %v768 = vsel %vm755, %v735, -inf
    %v769 = vsel %vm755, %v740, -inf
    %v770 = vsel %vm755, %v745, -inf
    %v771 = vsel %vm755, %v750, -inf
    %772 = vmax.xlane.f32.xlu0 %v756
    %v773 = vpop.xlane.xlu0 %772
    %774 = vmax.xlane.f32.xlu0 %v757
    %v775 = vpop.xlane.xlu0 %774
    %776 = vmax.xlane.f32.xlu0 %v758
    %v777 = vpop.xlane.xlu0 %776
    %778 = vmax.xlane.f32.xlu0 %v759
    %v779 = vpop.xlane.xlu0 %778
    %780 = vmax.xlane.f32.xlu0 %v760
    %v781 = vpop.xlane.xlu0 %780
    %782 = vmax.xlane.f32.xlu0 %v761
    %v783 = vpop.xlane.xlu0 %782
    %784 = vmax.xlane.f32.xlu0 %v762
    %v785 = vpop.xlane.xlu0 %784
    %786 = vmax.xlane.f32.xlu0 %v763
    %v787 = vpop.xlane.xlu0 %786
    %788 = vmax.xlane.f32.xlu0 %v764
    %v789 = vpop.xlane.xlu0 %788
    %790 = vmax.xlane.f32.xlu0 %v765
    %v791 = vpop.xlane.xlu0 %790
    %792 = vmax.xlane.f32.xlu0 %v766
    %v793 = vpop.xlane.xlu0 %792
    %794 = vmax.xlane.f32.xlu0 %v767
    %v795 = vpop.xlane.xlu0 %794
    %796 = vmax.xlane.f32.xlu0 %v768
    %v797 = vpop.xlane.xlu0 %796
    %798 = vmax.xlane.f32.xlu0 %v769
    %v799 = vpop.xlane.xlu0 %798
    %800 = vmax.xlane.f32.xlu0 %v770
    %v801 = vpop.xlane.xlu0 %800
    %802 = vmax.xlane.f32.xlu0 %v771
    %v803 = vpop.xlane.xlu0 %802
    %v804 = vsub.f32 %v756, %v773
    %v805 = vsub.f32 %v757, %v775
    %v806 = vsub.f32 %v758, %v777
    %v807 = vsub.f32 %v759, %v779
    %v808 = vsub.f32 %v760, %v781
    %v809 = vsub.f32 %v761, %v783
    %v810 = vsub.f32 %v762, %v785
    %v811 = vsub.f32 %v763, %v787
    %v812 = vsub.f32 %v764, %v789
    %v813 = vsub.f32 %v765, %v791
    %v814 = vsub.f32 %v766, %v793
    %v815 = vsub.f32 %v767, %v795
    %v816 = vsub.f32 %v768, %v797
    %v817 = vsub.f32 %v769, %v799
    %v818 = vsub.f32 %v770, %v801
    %v819 = vsub.f32 %v771, %v803
    %v820 = vmul.f32 %v804, 1.442695
    %v821 = vpow.pop %v820
    %v822 = vmul.f32 %v805, 1.442695
    %v823 = vpow.pop %v822
    %v824 = vmul.f32 %v806, 1.442695
    %v825 = vpow.pop %v824
    %v826 = vmul.f32 %v807, 1.442695
    %v827 = vpow.pop %v826
    %v828 = vmul.f32 %v808, 1.442695
    %v829 = vpow.pop %v828
    %v830 = vmul.f32 %v809, 1.442695
    %v831 = vpow.pop %v830
    %v832 = vmul.f32 %v810, 1.442695
    %v833 = vpow.pop %v832
    %v834 = vmul.f32 %v811, 1.442695
    %v835 = vpow.pop %v834
    %v836 = vmul.f32 %v812, 1.442695
    %v837 = vpow.pop %v836
    %v838 = vmul.f32 %v813, 1.442695
    %v839 = vpow.pop %v838
    %v840 = vmul.f32 %v814, 1.442695
    %v841 = vpow.pop %v840
    %v842 = vmul.f32 %v815, 1.442695
    %v843 = vpow.pop %v842
    %v844 = vmul.f32 %v816, 1.442695
    %v845 = vpow.pop %v844
    %v846 = vmul.f32 %v817, 1.442695
    %v847 = vpow.pop %v846
    %v848 = vmul.f32 %v818, 1.442695
    %v849 = vpow.pop %v848
    %v850 = vmul.f32 %v819, 1.442695
    %v851 = vpow.pop %v850
    %v852 = vsel %vm755, %v821, 0.0
    %v853 = vsel %vm755, %v823, 0.0
    %v854 = vsel %vm755, %v825, 0.0
    %v855 = vsel %vm755, %v827, 0.0
    %v856 = vsel %vm755, %v829, 0.0
    %v857 = vsel %vm755, %v831, 0.0
    %v858 = vsel %vm755, %v833, 0.0
    %v859 = vsel %vm755, %v835, 0.0
    %v860 = vsel %vm755, %v837, 0.0
    %v861 = vsel %vm755, %v839, 0.0
    %v862 = vsel %vm755, %v841, 0.0
    %v863 = vsel %vm755, %v843, 0.0
    %v864 = vsel %vm755, %v845, 0.0
    %v865 = vsel %vm755, %v847, 0.0
    %v866 = vsel %vm755, %v849, 0.0
    %v867 = vsel %vm755, %v851, 0.0
    %868 = vadd.xlane.f32.xlu0 %v852
    %v869 = vpop.xlane.xlu0 %868
    %870 = vadd.xlane.f32.xlu0 %v853
    %v871 = vpop.xlane.xlu0 %870
    %872 = vadd.xlane.f32.xlu0 %v854
    %v873 = vpop.xlane.xlu0 %872
    %874 = vadd.xlane.f32.xlu0 %v855
    %v875 = vpop.xlane.xlu0 %874
    %876 = vadd.xlane.f32.xlu0 %v856
    %v877 = vpop.xlane.xlu0 %876
    %878 = vadd.xlane.f32.xlu0 %v857
    %v879 = vpop.xlane.xlu0 %878
    %880 = vadd.xlane.f32.xlu0 %v858
    %v881 = vpop.xlane.xlu0 %880
    %882 = vadd.xlane.f32.xlu0 %v859
    %v883 = vpop.xlane.xlu0 %882
    %884 = vadd.xlane.f32.xlu0 %v860
    %v885 = vpop.xlane.xlu0 %884
    %886 = vadd.xlane.f32.xlu0 %v861
    %v887 = vpop.xlane.xlu0 %886
    %888 = vadd.xlane.f32.xlu0 %v862
    %v889 = vpop.xlane.xlu0 %888
    %890 = vadd.xlane.f32.xlu0 %v863
    %v891 = vpop.xlane.xlu0 %890
    %892 = vadd.xlane.f32.xlu0 %v864
    %v893 = vpop.xlane.xlu0 %892
    %894 = vadd.xlane.f32.xlu0 %v865
    %v895 = vpop.xlane.xlu0 %894
    %896 = vadd.xlane.f32.xlu0 %v866
    %v897 = vpop.xlane.xlu0 %896
    %898 = vadd.xlane.f32.xlu0 %v867
    %v899 = vpop.xlane.xlu0 %898
    %v900 = vlog2.pop %v869
    %v901 = vmul.f32 %v900, 0.6931472
    %v902 = vlog2.pop %v871
    %v903 = vmul.f32 %v902, 0.6931472
    %v904 = vlog2.pop %v873
    %v905 = vmul.f32 %v904, 0.6931472
    %v906 = vlog2.pop %v875
    %v907 = vmul.f32 %v906, 0.6931472
    %v908 = vlog2.pop %v877
    %v909 = vmul.f32 %v908, 0.6931472
    %v910 = vlog2.pop %v879
    %v911 = vmul.f32 %v910, 0.6931472
    %v912 = vlog2.pop %v881
    %v913 = vmul.f32 %v912, 0.6931472
    %v914 = vlog2.pop %v883
    %v915 = vmul.f32 %v914, 0.6931472
    %v916 = vlog2.pop %v885
    %v917 = vmul.f32 %v916, 0.6931472
    %v918 = vlog2.pop %v887
    %v919 = vmul.f32 %v918, 0.6931472
    %v920 = vlog2.pop %v889
    %v921 = vmul.f32 %v920, 0.6931472
    %v922 = vlog2.pop %v891
    %v923 = vmul.f32 %v922, 0.6931472
    %v924 = vlog2.pop %v893
    %v925 = vmul.f32 %v924, 0.6931472
    %v926 = vlog2.pop %v895
    %v927 = vmul.f32 %v926, 0.6931472
    %v928 = vlog2.pop %v897
    %v929 = vmul.f32 %v928, 0.6931472
    %v930 = vlog2.pop %v899
    %v931 = vmul.f32 %v930, 0.6931472
    %v932 = vsub.f32 %v804, %v901
    %v933 = vsub.f32 %v805, %v903
    %v934 = vsub.f32 %v806, %v905
    %v935 = vsub.f32 %v807, %v907
    %v936 = vsub.f32 %v808, %v909
    %v937 = vsub.f32 %v809, %v911
    %v938 = vsub.f32 %v810, %v913
    %v939 = vsub.f32 %v811, %v915
    %v940 = vsub.f32 %v812, %v917
    %v941 = vsub.f32 %v813, %v919
    %v942 = vsub.f32 %v814, %v921
    %v943 = vsub.f32 %v815, %v923
    %v944 = vsub.f32 %v816, %v925
    %v945 = vsub.f32 %v817, %v927
    %v946 = vsub.f32 %v818, %v929
    %v947 = vsub.f32 %v819, %v931
    %v948 = vsel %vm755, %v932, 0.0
    %v949 = vsel %vm755, %v933, 0.0
    %v950 = vsel %vm755, %v934, 0.0
    %v951 = vsel %vm755, %v935, 0.0
    %v952 = vsel %vm755, %v936, 0.0
    %v953 = vsel %vm755, %v937, 0.0
    %v954 = vsel %vm755, %v938, 0.0
    %v955 = vsel %vm755, %v939, 0.0
    %v956 = vsel %vm755, %v940, 0.0
    %v957 = vsel %vm755, %v941, 0.0
    %v958 = vsel %vm755, %v942, 0.0
    %v959 = vsel %vm755, %v943, 0.0
    %v960 = vsel %vm755, %v944, 0.0
    %v961 = vsel %vm755, %v945, 0.0
    %v962 = vsel %vm755, %v946, 0.0
    %v963 = vsel %vm755, %v947, 0.0
    %964 = vst [vmem:[#allocation10] sm:$0xff] %v948
    %965 = vst [vmem:[#allocation10 + $0x8] sm:$0xff] %v949
    %966 = vst [vmem:[#allocation10 + $0x10] sm:$0xff] %v950
    %967 = vst [vmem:[#allocation10 + $0x18] sm:$0xff] %v951
    %968 = vst [vmem:[#allocation10 + $0x20] sm:$0xff] %v952
    %969 = vst [vmem:[#allocation10 + $0x28] sm:$0xff] %v953
    %970 = vst [vmem:[#allocation10 + $0x30] sm:$0xff] %v954
    %971 = vst [vmem:[#allocation10 + $0x38] sm:$0xff] %v955
    %972 = vst [vmem:[#allocation10 + $0x40] sm:$0xff] %v956
    %973 = vst [vmem:[#allocation10 + $0x48] sm:$0xff] %v957
    %974 = vst [vmem:[#allocation10 + $0x50] sm:$0xff] %v958
    %975 = vst [vmem:[#allocation10 + $0x58] sm:$0xff] %v959
    %976 = vst [vmem:[#allocation10 + $0x60] sm:$0xff] %v960
    %977 = vst [vmem:[#allocation10 + $0x68] sm:$0xff] %v961
    %978 = vst [vmem:[#allocation10 + $0x70] sm:$0xff] %v962
    %979 = vst [vmem:[#allocation10 + $0x78] sm:$0xff] %v963
    // Predicated region
    $region42: #{tpu_custom_call.1} parent=1 // pred_check
      _
    $region43: #{tpu_custom_call.1} parent=1 // pred_check_branch
      %981 = sbr.rel (0) target = $region45
    $region44: #{tpu_custom_call.1} parent=1 // pred_region
      %s983 = ssub.s32 2048, 2048
      %984 = vsyncadd [#allocation4], %s983
      %s985 = sshll.u32 [#allocation10], 4
      %s986 = int_to_ptr.vmem [resolvable:$true] %s985
      %991 = dma.vmem_to_hbm [thread:$0]  %s986, 2048, %s6, [#allocation4], 128, 128, 8
    $region45: #{tpu_custom_call.1} parent=1 // pred_fallthru
      _
    // Predicated region
    $region46: #{tpu_custom_call.1} parent=1 // pred_check
      _
    $region47: #{tpu_custom_call.1} parent=1 // pred_check_branch
      %993 = sbr.rel (0) target = $region49
    $region48: #{tpu_custom_call.1} parent=1 // pred_region
      %994 = dma.done [#allocation4], 2048
    $region49: #{tpu_custom_call.1} parent=1 // pred_fallthru
      _
    %995 = vsyncpa [#allocation3], 1
    %996 = vsyncpa [#allocation6], 1
    %997 = vsyncpa [#allocation9], 1
    %998 = vsyncpa [#allocation4], 1

</llo_original>
